<compile_context>
chip_gen: v7x
topology: tpu7x:2x2x1
jax: 0.10.0
libtpu: 0.0.40
codegen_flags: <defaults>
</compile_context>

<pallas_src>
import functools

import jax
import jax.numpy as jnp
from jax.experimental import pallas as pl
from jax.experimental.pallas import tpu as pltpu

EPS = 1e-5
NEG_SLOPE = 0.01


def _round_up(x, m):
    return (x + m - 1) // m * m


def _bn_act(h, gamma, beta):
    """Training-mode BatchNorm1d (biased batch variance) fused with LeakyReLU."""
    mean = jnp.mean(h, axis=0, keepdims=True)
    centered = h - mean
    var = jnp.mean(centered * centered, axis=0, keepdims=True)
    scale = gamma * jax.lax.rsqrt(var + EPS)
    y = centered * scale + beta
    return jnp.where(y >= 0, y, NEG_SLOPE * y)


def _mlp_kernel(x_ref, w_ref, v_ref, o_ref, *, dims, row_offs):
    d0, d1, d2, d3, _ = dims
    r1, r2 = row_offs

    x = x_ref[...]
    W = w_ref[...]
    V = v_ref[...]

    # Layer 1: Linear (bias absorbed by BN mean) + BN + leaky_relu.
    h = jnp.dot(x, W[0:d0, 0:d1], preferred_element_type=jnp.float32)
    h = _bn_act(h, V[0:1, 0:d1], V[1:2, 0:d1])

    # Layer 2.
    h = jnp.dot(h, W[r1:r1 + d1, 0:d2], preferred_element_type=jnp.float32)
    h = _bn_act(h, V[2:3, 0:d2], V[3:4, 0:d2])

    # Layer 3.
    h = jnp.dot(h, W[r2:r2 + d2, 0:d3], preferred_element_type=jnp.float32)
    h = _bn_act(h, V[4:5, 0:d3], V[5:6, 0:d3])

    # Output layer (dout = 1): VPU broadcast-mul + lane reduce; b4 is the
    # only bias that survives mathematically.
    w4_row = V[6:7, 0:d3]               # (1, d3) == w4.T
    b4 = V[7:8, 0:1]                    # (1, 1)
    o_ref[...] = jnp.sum(h * w4_row, axis=-1, keepdims=True) + b4


def init_params(key, n, c):
    """Deterministic init mimicking PyTorch defaults (U(-1/sqrt(fan_in), ...))."""
    d0 = n * (n - 1) // 2
    d1 = 3 * n * (n - 1) // 4
    d2 = c
    d3 = c // 20
    d4 = 1
    shapes = [(d0, d1), (d1, d2), (d2, d3), (d3, d4)]

    params = {}
    keys = jax.random.split(key, 8)
    for li, (din, dout) in enumerate(shapes, start=1):
        bound = 1.0 / (din ** 0.5)
        params[f"w{li}"] = jax.random.uniform(
            keys[2 * (li - 1)], (din, dout), jnp.float32, -bound, bound)
        params[f"b{li}"] = jax.random.uniform(
            keys[2 * (li - 1) + 1], (1, dout), jnp.float32, -bound, bound)
    # BatchNorm affine params: gamma=1, beta=0 (PyTorch default).
    for bi, dout in zip((1, 2, 3), (d1, d2, d3)):
        params[f"g{bi}"] = jnp.ones((1, dout), jnp.float32)
        params[f"be{bi}"] = jnp.zeros((1, dout), jnp.float32)
    return params, (d0, d1, d2, d3, d4)


def pack_params(params, dims):
    """Pack all weights into one slab and all 1-row vectors into another."""
    d0, d1, d2, d3, _ = dims

    # Weight slab: row blocks aligned to 8 sublanes, shared (max) width.
    r1 = _round_up(d0, 8)               # start row of w2
    r2 = r1 + _round_up(d1, 8)          # start row of w3
    rows = r2 + _round_up(d2, 8)
    width = max(d1, d2, d3)
    W = jnp.zeros((rows, width), jnp.float32)
    W = W.at[0:d0, 0:d1].set(params["w1"])
    W = W.at[r1:r1 + d1, 0:d2].set(params["w2"])
    W = W.at[r2:r2 + d2, 0:d3].set(params["w3"])

    # Vector slab: gamma/beta for the 3 BN layers, w4^T and b4. 8 rows.
    vw = max(d1, d2, d3, 1)
    V = jnp.zeros((8, vw), jnp.float32)
    V = V.at[0, 0:d1].set(params["g1"][0])
    V = V.at[1, 0:d1].set(params["be1"][0])
    V = V.at[2, 0:d2].set(params["g2"][0])
    V = V.at[3, 0:d2].set(params["be2"][0])
    V = V.at[4, 0:d3].set(params["g3"][0])
    V = V.at[5, 0:d3].set(params["be3"][0])
    V = V.at[6, 0:d3].set(params["w4"][:, 0])   # w4 transposed row
    V = V.at[7, 0:1].set(params["b4"][0])
    return W, V, (r1, r2)


def net_without_split(x, params, dims):
    d0, d1, d2, d3, d4 = dims
    B = x.shape[0]
    W_slab, V_slab, row_offs = pack_params(params, dims)

    kernel = functools.partial(_mlp_kernel, dims=dims, row_offs=row_offs)

    # Everything is tiny -> single grid point, whole arrays resident in VMEM.
    vmem = pl.BlockSpec(memory_space=pltpu.MemorySpace.VMEM)
    flops = 2 * B * (d0 * d1 + d1 * d2 + d2 * d3 + d3 * d4)
    bytes_accessed = 4 * (x.size + W_slab.size + V_slab.size + B * d4)

    return pl.pallas_call(
        kernel,
        out_shape=jax.ShapeDtypeStruct((B, d4), jnp.float32),
        in_specs=[vmem, vmem, vmem],
        out_specs=vmem,
        cost_estimate=pl.CostEstimate(
            flops=flops,
            transcendentals=d1 + d2 + d3,     # one rsqrt per BN feature
            bytes_accessed=bytes_accessed),
    )(x, W_slab, V_slab)


def reference(x, params):
    """Pure-JAX reference with the original (bias-included) PyTorch semantics."""
    h = x @ params["w1"] + params["b1"]
    h = _bn_act(h, params["g1"], params["be1"])
    h = h @ params["w2"] + params["b2"]
    h = _bn_act(h, params["g2"], params["be2"])
    h = h @ params["w3"] + params["b3"]
    h = _bn_act(h, params["g3"], params["be3"])
    return h @ params["w4"] + params["b4"]


if __name__ == "__main__":
    n, c = 9, 40          # input dim = 36, hidden1 = 54, hidden2 = 40, hidden3 = 2
    B = 8                 # batch > 1 required for training-mode BatchNorm

    key = jax.random.PRNGKey(0)
    pkey, xkey = jax.random.split(key)
    params, dims = init_params(pkey, n, c)

    x = jax.random.normal(xkey, (B, dims[0]), jnp.float32)

    out = jax.block_until_ready(net_without_split(x, params, dims))

    ref = reference(x, params)
    assert out.shape == (B, 1)
    assert jnp.allclose(out, ref, atol=1e-4, rtol=1e-4), "mismatch vs JAX reference"

    print("KERNEL_OK")
</pallas_src>

<mosaic_0001>
module attributes {stable_mosaic.version = 11 : i64} {
  func.func @_mlp_kernel(%arg0: memref<8x36xf32, #tpu.memory_space<vmem>>, %arg1: memref<136x54xf32, #tpu.memory_space<vmem>>, %arg2: memref<8x54xf32, #tpu.memory_space<vmem>>, %arg3: memref<8x1xf32, #tpu.memory_space<vmem>>) attributes {dimension_semantics = [], scalar_prefetch = 0 : i64, scratch_operands = 0 : i64, tpu.core_type = #tpu.core_type<tc>} {
    %c0 = arith.constant 0 : index
    %c0_0 = arith.constant 0 : index
    %0 = vector.load %arg0[%c0, %c0_0] : memref<8x36xf32, #tpu.memory_space<vmem>>, vector<8x36xf32>
    %c0_1 = arith.constant 0 : index
    %c0_2 = arith.constant 0 : index
    %1 = vector.load %arg1[%c0_1, %c0_2] : memref<136x54xf32, #tpu.memory_space<vmem>>, vector<136x54xf32>
    %c0_3 = arith.constant 0 : index
    %c0_4 = arith.constant 0 : index
    %2 = vector.load %arg2[%c0_3, %c0_4] : memref<8x54xf32, #tpu.memory_space<vmem>>, vector<8x54xf32>
    %3 = vector.extract_strided_slice %1 {offsets = [0, 0], sizes = [36, 54], strides = [1, 1]} : vector<136x54xf32> to vector<36x54xf32>
    %cst = arith.constant dense<0.000000e+00> : vector<8x54xf32>
    %4 = tpu.matmul %0, %3, %cst {dimension_numbers = #tpu.dot_dimension_numbers<[1], [0], [0], [1], [0, 0, 1, 1], [], []>} : vector<8x36xf32>, vector<36x54xf32>, vector<8x54xf32> -> vector<8x54xf32>
    %5 = vector.extract_strided_slice %2 {offsets = [0, 0], sizes = [1, 54], strides = [1, 1]} : vector<8x54xf32> to vector<1x54xf32>
    %6 = vector.extract_strided_slice %2 {offsets = [1, 0], sizes = [1, 54], strides = [1, 1]} : vector<8x54xf32> to vector<1x54xf32>
    %cst_5 = arith.constant dense<0.000000e+00> : vector<54xf32>
    %7 = vector.multi_reduction <add>, %4, %cst_5 [0] : vector<8x54xf32> to vector<54xf32>
    %8 = vector.shape_cast %7 : vector<54xf32> to vector<1x54xf32>
    %cst_6 = arith.constant 8.000000e+00 : f32
    %9 = vector.broadcast %cst_6 : f32 to vector<1x54xf32>
    %10 = arith.divf %8, %9 : vector<1x54xf32>
    %11 = vector.broadcast %10 : vector<1x54xf32> to vector<8x54xf32>
    %12 = arith.subf %4, %11 : vector<8x54xf32>
    %13 = arith.mulf %12, %12 : vector<8x54xf32>
    %cst_7 = arith.constant dense<0.000000e+00> : vector<54xf32>
    %14 = vector.multi_reduction <add>, %13, %cst_7 [0] : vector<8x54xf32> to vector<54xf32>
    %15 = vector.shape_cast %14 : vector<54xf32> to vector<1x54xf32>
    %cst_8 = arith.constant 8.000000e+00 : f32
    %16 = vector.broadcast %cst_8 : f32 to vector<1x54xf32>
    %17 = arith.divf %15, %16 : vector<1x54xf32>
    %cst_9 = arith.constant 9.99999974E-6 : f32
    %18 = vector.broadcast %cst_9 : f32 to vector<1x54xf32>
    %19 = arith.addf %17, %18 : vector<1x54xf32>
    %20 = math.rsqrt %19 : vector<1x54xf32>
    %21 = arith.mulf %5, %20 : vector<1x54xf32>
    %22 = vector.broadcast %21 : vector<1x54xf32> to vector<8x54xf32>
    %23 = arith.mulf %12, %22 : vector<8x54xf32>
    %24 = vector.broadcast %6 : vector<1x54xf32> to vector<8x54xf32>
    %25 = arith.addf %23, %24 : vector<8x54xf32>
    %cst_10 = arith.constant 0.000000e+00 : f32
    %26 = vector.broadcast %cst_10 : f32 to vector<8x54xf32>
    %27 = arith.cmpf oge, %25, %26 : vector<8x54xf32>
    %cst_11 = arith.constant 0.00999999977 : f32
    %28 = vector.broadcast %cst_11 : f32 to vector<8x54xf32>
    %29 = arith.mulf %28, %25 : vector<8x54xf32>
    %30 = arith.select %27, %25, %29 : vector<8x54xi1>, vector<8x54xf32>
    %31 = vector.extract_strided_slice %1 {offsets = [40, 0], sizes = [54, 40], strides = [1, 1]} : vector<136x54xf32> to vector<54x40xf32>
    %cst_12 = arith.constant dense<0.000000e+00> : vector<8x40xf32>
    %32 = tpu.matmul %30, %31, %cst_12 {dimension_numbers = #tpu.dot_dimension_numbers<[1], [0], [0], [1], [0, 0, 1, 1], [], []>} : vector<8x54xf32>, vector<54x40xf32>, vector<8x40xf32> -> vector<8x40xf32>
    %33 = vector.extract_strided_slice %2 {offsets = [2, 0], sizes = [1, 40], strides = [1, 1]} : vector<8x54xf32> to vector<1x40xf32>
    %34 = vector.extract_strided_slice %2 {offsets = [3, 0], sizes = [1, 40], strides = [1, 1]} : vector<8x54xf32> to vector<1x40xf32>
    %cst_13 = arith.constant dense<0.000000e+00> : vector<40xf32>
    %35 = vector.multi_reduction <add>, %32, %cst_13 [0] : vector<8x40xf32> to vector<40xf32>
    %36 = vector.shape_cast %35 : vector<40xf32> to vector<1x40xf32>
    %cst_14 = arith.constant 8.000000e+00 : f32
    %37 = vector.broadcast %cst_14 : f32 to vector<1x40xf32>
    %38 = arith.divf %36, %37 : vector<1x40xf32>
    %39 = vector.broadcast %38 : vector<1x40xf32> to vector<8x40xf32>
    %40 = arith.subf %32, %39 : vector<8x40xf32>
    %41 = arith.mulf %40, %40 : vector<8x40xf32>
    %cst_15 = arith.constant dense<0.000000e+00> : vector<40xf32>
    %42 = vector.multi_reduction <add>, %41, %cst_15 [0] : vector<8x40xf32> to vector<40xf32>
    %43 = vector.shape_cast %42 : vector<40xf32> to vector<1x40xf32>
    %cst_16 = arith.constant 8.000000e+00 : f32
    %44 = vector.broadcast %cst_16 : f32 to vector<1x40xf32>
    %45 = arith.divf %43, %44 : vector<1x40xf32>
    %cst_17 = arith.constant 9.99999974E-6 : f32
    %46 = vector.broadcast %cst_17 : f32 to vector<1x40xf32>
    %47 = arith.addf %45, %46 : vector<1x40xf32>
    %48 = math.rsqrt %47 : vector<1x40xf32>
    %49 = arith.mulf %33, %48 : vector<1x40xf32>
    %50 = vector.broadcast %49 : vector<1x40xf32> to vector<8x40xf32>
    %51 = arith.mulf %40, %50 : vector<8x40xf32>
    %52 = vector.broadcast %34 : vector<1x40xf32> to vector<8x40xf32>
    %53 = arith.addf %51, %52 : vector<8x40xf32>
    %cst_18 = arith.constant 0.000000e+00 : f32
    %54 = vector.broadcast %cst_18 : f32 to vector<8x40xf32>
    %55 = arith.cmpf oge, %53, %54 : vector<8x40xf32>
    %cst_19 = arith.constant 0.00999999977 : f32
    %56 = vector.broadcast %cst_19 : f32 to vector<8x40xf32>
    %57 = arith.mulf %56, %53 : vector<8x40xf32>
    %58 = arith.select %55, %53, %57 : vector<8x40xi1>, vector<8x40xf32>
    %59 = vector.extract_strided_slice %1 {offsets = [96, 0], sizes = [40, 2], strides = [1, 1]} : vector<136x54xf32> to vector<40x2xf32>
    %cst_20 = arith.constant dense<0.000000e+00> : vector<8x2xf32>
    %60 = tpu.matmul %58, %59, %cst_20 {dimension_numbers = #tpu.dot_dimension_numbers<[1], [0], [0], [1], [0, 0, 1, 1], [], []>} : vector<8x40xf32>, vector<40x2xf32>, vector<8x2xf32> -> vector<8x2xf32>
    %61 = vector.extract_strided_slice %2 {offsets = [4, 0], sizes = [1, 2], strides = [1, 1]} : vector<8x54xf32> to vector<1x2xf32>
    %62 = vector.extract_strided_slice %2 {offsets = [5, 0], sizes = [1, 2], strides = [1, 1]} : vector<8x54xf32> to vector<1x2xf32>
    %cst_21 = arith.constant dense<0.000000e+00> : vector<2xf32>
    %63 = vector.multi_reduction <add>, %60, %cst_21 [0] : vector<8x2xf32> to vector<2xf32>
    %64 = vector.shape_cast %63 : vector<2xf32> to vector<1x2xf32>
    %cst_22 = arith.constant 8.000000e+00 : f32
    %65 = vector.broadcast %cst_22 : f32 to vector<1x2xf32>
    %66 = arith.divf %64, %65 : vector<1x2xf32>
    %67 = vector.broadcast %66 : vector<1x2xf32> to vector<8x2xf32>
    %68 = arith.subf %60, %67 : vector<8x2xf32>
    %69 = arith.mulf %68, %68 : vector<8x2xf32>
    %cst_23 = arith.constant dense<0.000000e+00> : vector<2xf32>
    %70 = vector.multi_reduction <add>, %69, %cst_23 [0] : vector<8x2xf32> to vector<2xf32>
    %71 = vector.shape_cast %70 : vector<2xf32> to vector<1x2xf32>
    %cst_24 = arith.constant 8.000000e+00 : f32
    %72 = vector.broadcast %cst_24 : f32 to vector<1x2xf32>
    %73 = arith.divf %71, %72 : vector<1x2xf32>
    %cst_25 = arith.constant 9.99999974E-6 : f32
    %74 = vector.broadcast %cst_25 : f32 to vector<1x2xf32>
    %75 = arith.addf %73, %74 : vector<1x2xf32>
    %76 = math.rsqrt %75 : vector<1x2xf32>
    %77 = arith.mulf %61, %76 : vector<1x2xf32>
    %78 = vector.broadcast %77 : vector<1x2xf32> to vector<8x2xf32>
    %79 = arith.mulf %68, %78 : vector<8x2xf32>
    %80 = vector.broadcast %62 : vector<1x2xf32> to vector<8x2xf32>
    %81 = arith.addf %79, %80 : vector<8x2xf32>
    %cst_26 = arith.constant 0.000000e+00 : f32
    %82 = vector.broadcast %cst_26 : f32 to vector<8x2xf32>
    %83 = arith.cmpf oge, %81, %82 : vector<8x2xf32>
    %cst_27 = arith.constant 0.00999999977 : f32
    %84 = vector.broadcast %cst_27 : f32 to vector<8x2xf32>
    %85 = arith.mulf %84, %81 : vector<8x2xf32>
    %86 = arith.select %83, %81, %85 : vector<8x2xi1>, vector<8x2xf32>
    %87 = vector.extract_strided_slice %2 {offsets = [6, 0], sizes = [1, 2], strides = [1, 1]} : vector<8x54xf32> to vector<1x2xf32>
    %88 = vector.extract_strided_slice %2 {offsets = [7, 0], sizes = [1, 1], strides = [1, 1]} : vector<8x54xf32> to vector<1x1xf32>
    %89 = vector.broadcast %87 : vector<1x2xf32> to vector<8x2xf32>
    %90 = arith.mulf %86, %89 : vector<8x2xf32>
    %cst_28 = arith.constant dense<0.000000e+00> : vector<8xf32>
    %91 = vector.multi_reduction <add>, %90, %cst_28 [1] : vector<8x2xf32> to vector<8xf32>
    %92 = vector.shape_cast %91 : vector<8xf32> to vector<8x1xf32>
    %93 = vector.broadcast %88 : vector<1x1xf32> to vector<8x1xf32>
    %94 = arith.addf %92, %93 : vector<8x1xf32>
    %c0_29 = arith.constant 0 : index
    %c0_30 = arith.constant 0 : index
    %95 = vector.load %arg3[%c0_29, %c0_30] : memref<8x1xf32, #tpu.memory_space<vmem>>, vector<8x1xf32>
    tpu.vector_store %arg3[%c0_29, %c0_30], %94 {strides = array<i32>} : memref<8x1xf32, #tpu.memory_space<vmem>>, vector<8x1xf32>,
    return
  }
}

</mosaic_0001>

<llo_original>
// kernel: tpu_custom_call.1
$region0: #{tpu_custom_call.1}
  #allocation0 [shape = 'u32[]', space=smem, size = 0x4, offset = 0x4, fixed_abs, tag = 'smem constant byte address 0x4 - core index']
  #allocation1 [shape = 'u32[144,128]{1,0:T(1,128)}', space=vmem, size = 0x12000, scoped, tag = 'internal scratch']
  %s0 = inlined_call_operand.vmem [shape: f32[8,36], index: 0, kind: input, shape index: {}]
  %s1 = inlined_call_operand.vmem [shape: f32[136,54], index: 1, kind: input, shape index: {}]
  %s2 = inlined_call_operand.vmem [shape: f32[8,54], index: 2, kind: input, shape index: {}]
  %s3 = inlined_call_operand.vmem [shape: f32[8,1], index: 3, kind: output, shape index: {}]
  %s4 = sld [smem:[#allocation0]]
  $region22: #{tpu_custom_call.1} parent=0
    _
  %s6 = ssub.s32 1, %s4
  %s7 = scalar_select 0, %s6, %s4
  // Predicated region
  $region2: #{tpu_custom_call.1} parent=0 // pred_check
    _
  $region3: #{tpu_custom_call.1} parent=0 // pred_check_branch
    %9 = sbr.rel (0) target = $region5
  $region4: #{tpu_custom_call.1} parent=0 // pred_region
    _
  $region5: #{tpu_custom_call.1} parent=0 // pred_fallthru
    _
  // Predicated region
  $region6: #{tpu_custom_call.1} parent=0 // pred_check
    _
  $region7: #{tpu_custom_call.1} parent=0 // pred_check_branch
    %11 = sbr.rel (0) target = $region9
  $region8: #{tpu_custom_call.1} parent=0 // pred_region
    _
  $region9: #{tpu_custom_call.1} parent=0 // pred_fallthru
    _
  // Predicated region
  $region10: #{tpu_custom_call.1} parent=0 // pred_check
    _
  $region11: #{tpu_custom_call.1} parent=0 // pred_check_branch
    %13 = sbr.rel (0) target = $region13
  $region12: #{tpu_custom_call.1} parent=0 // pred_region
    _
  $region13: #{tpu_custom_call.1} parent=0 // pred_fallthru
    _
  %v14 = vld [vmem:[%s0] sm:$0xff]
  %v15 = vld [vmem:[%s1] sm:$0xff]
  %v16 = vld [vmem:[%s1 + $0x8] sm:$0xff]
  %v17 = vld [vmem:[%s1 + $0x10] sm:$0xff]
  %v18 = vld [vmem:[%s1 + $0x18] sm:$0xff]
  %v19 = vld [vmem:[%s1 + $0x20] sm:$0xff]
  %v20 = vld [vmem:[%s1 + $0x28] sm:$0xff]
  %v21 = vld [vmem:[%s1 + $0x30] sm:$0xff]
  %v22 = vld [vmem:[%s1 + $0x38] sm:$0xff]
  %v23 = vld [vmem:[%s1 + $0x40] sm:$0xff]
  %v24 = vld [vmem:[%s1 + $0x48] sm:$0xff]
  %v25 = vld [vmem:[%s1 + $0x50] sm:$0xff]
  %v26 = vld [vmem:[%s1 + $0x58] sm:$0xff]
  %v27 = vld [vmem:[%s1 + $0x60] sm:$0xff]
  %v28 = vld [vmem:[%s1 + $0x68] sm:$0xff]
  %v29 = vld [vmem:[%s1 + $0x70] sm:$0xff]
  %v30 = vld [vmem:[%s1 + $0x78] sm:$0xff]
  %v31 = vld [vmem:[%s1 + $0x80] sm:$0xff]
  %v32 = vld [vmem:[%s2] sm:$0xff]
  %vm33 = vcmask 293888
  %v35 = vsel %vm33, %v14, 0
  %vm37 = vcmask 1043456
  %v39 = vsel %vm37, %v19, 0
  %41 = vmatprep.subr.mxu0 0.0
  %42 = vmatpush1.msra.mxu0 %v15
  %43 = vmatprep.subr.mxu0 0.0
  %44 = vmatpush1.msra.mxu0 %v16
  %45 = vmatprep.subr.mxu0 0.0
  %46 = vmatpush1.msra.mxu0 %v17
  %47 = vmatprep.subr.mxu0 0.0
  %48 = vmatpush1.msra.mxu0 %v18
  %49 = vmatprep.subr.mxu0 0.0
  %50 = vmatpush1.msra.mxu0 %v39
  %51 = vmatprep.subr.mxu0 0.0
  %52 = vmatpush1.msra.mxu0 0.0
  %53 = vmatprep.subr.mxu0 0.0
  %54 = vmatpush1.msra.mxu0 0.0
  %55 = vmatprep.subr.mxu0 0.0
  %56 = vmatpush1.msra.mxu0 0.0
  %57 = vmatprep.subr.mxu0 0.0
  %58 = vmatpush1.msra.mxu0 0.0
  %59 = vmatprep.subr.mxu0 0.0
  %60 = vmatpush1.msra.mxu0 0.0
  %61 = vmatprep.subr.mxu0 0.0
  %62 = vmatpush1.msra.mxu0 0.0
  %63 = vmatprep.subr.mxu0 0.0
  %64 = vmatpush1.msra.mxu0 0.0
  %65 = vmatprep.subr.mxu0 0.0
  %66 = vmatpush1.msra.mxu0 0.0
  %67 = vmatprep.subr.mxu0 0.0
  %68 = vmatpush1.msra.mxu0 0.0
  %69 = vmatprep.subr.mxu0 0.0
  %70 = vmatpush1.msra.mxu0 0.0
  %71 = vmatprep.subr.mxu0 0.0
  %72 = vmatpush1.msra.mxu0 0.0
  %73 = vmatprep.subr.mxu0 0.0
  %74 = vmatpush1.msra.mxu0 0.0
  %75 = vmatprep.subr.mxu0 0.0
  %76 = vmatpush1.msra.mxu0 0.0
  %77 = vmatprep.subr.mxu0 0.0
  %78 = vmatpush1.msra.mxu0 0.0
  %79 = vmatprep.subr.mxu0 0.0
  %80 = vmatpush1.msra.mxu0 0.0
  %81 = vmatprep.subr.mxu0 0.0
  %82 = vmatpush1.msra.mxu0 0.0
  %83 = vmatprep.subr.mxu0 0.0
  %84 = vmatpush1.msra.mxu0 0.0
  %85 = vmatprep.subr.mxu0 0.0
  %86 = vmatpush1.msra.mxu0 0.0
  %87 = vmatprep.subr.mxu0 0.0
  %88 = vmatpush1.msra.mxu0 0.0
  %89 = vmatprep.subr.mxu0 0.0
  %90 = vmatpush1.msra.mxu0 0.0
  %91 = vmatprep.subr.mxu0 0.0
  %92 = vmatpush1.msra.mxu0 0.0
  %93 = vmatprep.subr.mxu0 0.0
  %94 = vmatpush1.msra.mxu0 0.0
  %95 = vmatprep.subr.mxu0 0.0
  %96 = vmatpush1.msra.mxu0 0.0
  %97 = vmatprep.subr.mxu0 0.0
  %98 = vmatpush1.msra.mxu0 0.0
  %99 = vmatprep.subr.mxu0 0.0
  %100 = vmatpush1.msra.mxu0 0.0
  %101 = vmatprep.subr.mxu0 0.0
  %102 = vmatpush1.msra.mxu0 0.0
  %103 = vmatprep.subr.mxu0 0.0
  %104 = vmatpush1.msra.mxu0 0.0
  %105 = vmatprep.mubr.f32.mxu0 0.0
  %106 = vmatmul.mubr.f32.gmra.mrb[0].mxu0 %v35
  %v107 = vpop.f32.mrb[0].mxu0
  %v108 = vadd.f32 0.0, %v107
  %v109 = vpop.f32.mrb[0].mxu0
  %110 = vdwg.mxu0
  %vm111 = vcmask 441344
  %v112 = vsel %vm111, %v108, 0.0
  %v113 = vrot.slane %v112, 4
  %v114 = vadd.f32 %v112, %v113
  %v115 = vrot.slane %v114, 2
  %v116 = vadd.f32 %v114, %v115
  %v117 = vrot.slane %v116, 1
  %v118 = vadd.f32 %v116, %v117
  %v119 = vrcp.pop 8.0
  %v120 = vmul.f32 %v118, %v119
  %v121 = vsub.f32 %v108, %v120
  %v122 = vmul.f32 %v121, %v121
  %v123 = vsel %vm111, %v122, 0.0
  %v124 = vrot.slane %v123, 4
  %v125 = vadd.f32 %v123, %v124
  %v126 = vrot.slane %v125, 2
  %v127 = vadd.f32 %v125, %v126
  %v128 = vrot.slane %v127, 1
  %v129 = vadd.f32 %v127, %v128
  %v130 = vmul.f32 %v129, %v119
  %v131 = vadd.f32 %v130, 1e-05
  %v132 = vrsqrt.pop %v131
  %v133 = vmul.f32 %v32, %v132
  %v134 = vlaneseq
  %v135 = vshrl.u32 %v134, 7
  %v136 = vsub.s32 0, %v135
  %v137 = vrot.slane %v133, %v136
  %v138 = vmul.f32 %v121, %v137
  %v139 = vlaneseq
  %v140 = vshrl.u32 %v139, 7
  %v141 = vsub.s32 1, %v140
  %v142 = vrot.slane %v32, %v141
  %v143 = vadd.f32 %v138, %v142
  %vm144 = vcmp.ge.f32.partialorder %v143, 0.0
  %v145 = vmul.f32 %v143, 0.01
  %v146 = vsel %vm144, %v143, %v145
  %v148 = vsel %vm111, %v146, 0
  %vm150 = vcmask 1045504
  %v152 = vsel %vm150, %v26, 0
  %154 = vmatprep.subr.mxu0 0.0
  %155 = vmatpush1.msra.mxu0 %v20
  %156 = vmatprep.subr.mxu0 0.0
  %157 = vmatpush1.msra.mxu0 %v21
  %158 = vmatprep.subr.mxu0 0.0
  %159 = vmatpush1.msra.mxu0 %v22
  %160 = vmatprep.subr.mxu0 0.0
  %161 = vmatpush1.msra.mxu0 %v23
  %162 = vmatprep.subr.mxu0 0.0
  %163 = vmatpush1.msra.mxu0 %v24
  %164 = vmatprep.subr.mxu0 0.0
  %165 = vmatpush1.msra.mxu0 %v25
  %166 = vmatprep.subr.mxu0 0.0
  %167 = vmatpush1.msra.mxu0 %v152
  %168 = vmatprep.subr.mxu0 0.0
  %169 = vmatpush1.msra.mxu0 0.0
  %170 = vmatprep.subr.mxu0 0.0
  %171 = vmatpush1.msra.mxu0 0.0
  %172 = vmatprep.subr.mxu0 0.0
  %173 = vmatpush1.msra.mxu0 0.0
  %174 = vmatprep.subr.mxu0 0.0
  %175 = vmatpush1.msra.mxu0 0.0
  %176 = vmatprep.subr.mxu0 0.0
  %177 = vmatpush1.msra.mxu0 0.0
  %178 = vmatprep.subr.mxu0 0.0
  %179 = vmatpush1.msra.mxu0 0.0
  %180 = vmatprep.subr.mxu0 0.0
  %181 = vmatpush1.msra.mxu0 0.0
  %182 = vmatprep.subr.mxu0 0.0
  %183 = vmatpush1.msra.mxu0 0.0
  %184 = vmatprep.subr.mxu0 0.0
  %185 = vmatpush1.msra.mxu0 0.0
  %186 = vmatprep.subr.mxu0 0.0
  %187 = vmatpush1.msra.mxu0 0.0
  %188 = vmatprep.subr.mxu0 0.0
  %189 = vmatpush1.msra.mxu0 0.0
  %190 = vmatprep.subr.mxu0 0.0
  %191 = vmatpush1.msra.mxu0 0.0
  %192 = vmatprep.subr.mxu0 0.0
  %193 = vmatpush1.msra.mxu0 0.0
  %194 = vmatprep.subr.mxu0 0.0
  %195 = vmatpush1.msra.mxu0 0.0
  %196 = vmatprep.subr.mxu0 0.0
  %197 = vmatpush1.msra.mxu0 0.0
  %198 = vmatprep.subr.mxu0 0.0
  %199 = vmatpush1.msra.mxu0 0.0
  %200 = vmatprep.subr.mxu0 0.0
  %201 = vmatpush1.msra.mxu0 0.0
  %202 = vmatprep.subr.mxu0 0.0
  %203 = vmatpush1.msra.mxu0 0.0
  %204 = vmatprep.subr.mxu0 0.0
  %205 = vmatpush1.msra.mxu0 0.0
  %206 = vmatprep.subr.mxu0 0.0
  %207 = vmatpush1.msra.mxu0 0.0
  %208 = vmatprep.subr.mxu0 0.0
  %209 = vmatpush1.msra.mxu0 0.0
  %210 = vmatprep.subr.mxu0 0.0
  %211 = vmatpush1.msra.mxu0 0.0
  %212 = vmatprep.subr.mxu0 0.0
  %213 = vmatpush1.msra.mxu0 0.0
  %214 = vmatprep.subr.mxu0 0.0
  %215 = vmatpush1.msra.mxu0 0.0
  %216 = vmatprep.subr.mxu0 0.0
  %217 = vmatpush1.msra.mxu0 0.0
  %218 = vmatprep.mubr.f32.mxu0 0.0
  %219 = vmatmul.mubr.f32.gmra.mrb[0].mxu0 %v148
  %v220 = vpop.f32.mrb[0].mxu0
  %v221 = vadd.f32 0.0, %v220
  %v222 = vpop.f32.mrb[0].mxu0
  %223 = vdwg.mxu0
  %vm224 = vcmask 326656
  %v225 = vsel %vm224, %v221, 0.0
  %v226 = vrot.slane %v225, 4
  %v227 = vadd.f32 %v225, %v226
  %v228 = vrot.slane %v227, 2
  %v229 = vadd.f32 %v227, %v228
  %v230 = vrot.slane %v229, 1
  %v231 = vadd.f32 %v229, %v230
  %v232 = vmul.f32 %v231, %v119
  %v233 = vsub.f32 %v221, %v232
  %v234 = vmul.f32 %v233, %v233
  %v235 = vsel %vm224, %v234, 0.0
  %v236 = vrot.slane %v235, 4
  %v237 = vadd.f32 %v235, %v236
  %v238 = vrot.slane %v237, 2
  %v239 = vadd.f32 %v237, %v238
  %v240 = vrot.slane %v239, 1
  %v241 = vadd.f32 %v239, %v240
  %v242 = vmul.f32 %v241, %v119
  %v243 = vadd.f32 %v242, 1e-05
  %v244 = vrsqrt.pop %v243
  %v245 = vmul.f32 %v32, %v244
  %v246 = vlaneseq
  %v247 = vshrl.u32 %v246, 7
  %v248 = vsub.s32 2, %v247
  %v249 = vrot.slane %v245, %v248
  %v250 = vmul.f32 %v233, %v249
  %v251 = vlaneseq
  %v252 = vshrl.u32 %v251, 7
  %v253 = vsub.s32 3, %v252
  %v254 = vrot.slane %v32, %v253
  %v255 = vadd.f32 %v250, %v254
  %vm256 = vcmp.ge.f32.partialorder %v255, 0.0
  %v257 = vmul.f32 %v255, 0.01
  %v258 = vsel %vm256, %v255, %v257
  %v260 = vsel %vm224, %v258, 0
  %262 = vmatprep.subr.mxu0 0.0
  %263 = vmatpush1.msra.mxu0 %v27
  %264 = vmatprep.subr.mxu0 0.0
  %265 = vmatpush1.msra.mxu0 %v28
  %266 = vmatprep.subr.mxu0 0.0
  %267 = vmatpush1.msra.mxu0 %v29
  %268 = vmatprep.subr.mxu0 0.0
  %269 = vmatpush1.msra.mxu0 %v30
  %270 = vmatprep.subr.mxu0 0.0
  %271 = vmatpush1.msra.mxu0 %v31
  %272 = vmatprep.subr.mxu0 0.0
  %273 = vmatpush1.msra.mxu0 0.0
  %274 = vmatprep.subr.mxu0 0.0
  %275 = vmatpush1.msra.mxu0 0.0
  %276 = vmatprep.subr.mxu0 0.0
  %277 = vmatpush1.msra.mxu0 0.0
  %278 = vmatprep.subr.mxu0 0.0
  %279 = vmatpush1.msra.mxu0 0.0
  %280 = vmatprep.subr.mxu0 0.0
  %281 = vmatpush1.msra.mxu0 0.0
  %282 = vmatprep.subr.mxu0 0.0
  %283 = vmatpush1.msra.mxu0 0.0
  %284 = vmatprep.subr.mxu0 0.0
  %285 = vmatpush1.msra.mxu0 0.0
  %286 = vmatprep.subr.mxu0 0.0
  %287 = vmatpush1.msra.mxu0 0.0
  %288 = vmatprep.subr.mxu0 0.0
  %289 = vmatpush1.msra.mxu0 0.0
  %290 = vmatprep.subr.mxu0 0.0
  %291 = vmatpush1.msra.mxu0 0.0
  %292 = vmatprep.subr.mxu0 0.0
  %293 = vmatpush1.msra.mxu0 0.0
  %294 = vmatprep.subr.mxu0 0.0
  %295 = vmatpush1.msra.mxu0 0.0
  %296 = vmatprep.subr.mxu0 0.0
  %297 = vmatpush1.msra.mxu0 0.0
  %298 = vmatprep.subr.mxu0 0.0
  %299 = vmatpush1.msra.mxu0 0.0
  %300 = vmatprep.subr.mxu0 0.0
  %301 = vmatpush1.msra.mxu0 0.0
  %302 = vmatprep.subr.mxu0 0.0
  %303 = vmatpush1.msra.mxu0 0.0
  %304 = vmatprep.subr.mxu0 0.0
  %305 = vmatpush1.msra.mxu0 0.0
  %306 = vmatprep.subr.mxu0 0.0
  %307 = vmatpush1.msra.mxu0 0.0
  %308 = vmatprep.subr.mxu0 0.0
  %309 = vmatpush1.msra.mxu0 0.0
  %310 = vmatprep.subr.mxu0 0.0
  %311 = vmatpush1.msra.mxu0 0.0
  %312 = vmatprep.subr.mxu0 0.0
  %313 = vmatpush1.msra.mxu0 0.0
  %314 = vmatprep.subr.mxu0 0.0
  %315 = vmatpush1.msra.mxu0 0.0
  %316 = vmatprep.subr.mxu0 0.0
  %317 = vmatpush1.msra.mxu0 0.0
  %318 = vmatprep.subr.mxu0 0.0
  %319 = vmatpush1.msra.mxu0 0.0
  %320 = vmatprep.subr.mxu0 0.0
  %321 = vmatpush1.msra.mxu0 0.0
  %322 = vmatprep.subr.mxu0 0.0
  %323 = vmatpush1.msra.mxu0 0.0
  %324 = vmatprep.subr.mxu0 0.0
  %325 = vmatpush1.msra.mxu0 0.0
  %326 = vmatprep.mubr.f32.mxu0 0.0
  %327 = vmatmul.mubr.f32.gmra.mrb[0].mxu0 %v260
  %v328 = vpop.f32.mrb[0].mxu0
  %v329 = vadd.f32 0.0, %v328
  %v330 = vpop.f32.mrb[0].mxu0
  %331 = vdwg.mxu0
  %vm332 = vcmask 15360
  %v333 = vsel %vm332, %v329, 0.0
  %v334 = vrot.slane %v333, 4
  %v335 = vadd.f32 %v333, %v334
  %v336 = vrot.slane %v335, 2
  %v337 = vadd.f32 %v335, %v336
  %v338 = vrot.slane %v337, 1
  %v339 = vadd.f32 %v337, %v338
  %v340 = vmul.f32 %v339, %v119
  %v341 = vsub.f32 %v329, %v340
  %v342 = vmul.f32 %v341, %v341
  %v343 = vsel %vm332, %v342, 0.0
  %v344 = vrot.slane %v343, 4
  %v345 = vadd.f32 %v343, %v344
  %v346 = vrot.slane %v345, 2
  %v347 = vadd.f32 %v345, %v346
  %v348 = vrot.slane %v347, 1
  %v349 = vadd.f32 %v347, %v348
  %v350 = vmul.f32 %v349, %v119
  %v351 = vadd.f32 %v350, 1e-05
  %v352 = vrsqrt.pop %v351
  %v353 = vmul.f32 %v32, %v352
  %v354 = vlaneseq
  %v355 = vshrl.u32 %v354, 7
  %v356 = vsub.s32 4, %v355
  %v357 = vrot.slane %v353, %v356
  %v358 = vmul.f32 %v341, %v357
  %v359 = vlaneseq
  %v360 = vshrl.u32 %v359, 7
  %v361 = vsub.s32 5, %v360
  %v362 = vrot.slane %v32, %v361
  %v363 = vadd.f32 %v358, %v362
  %vm364 = vcmp.ge.f32.partialorder %v363, 0.0
  %v365 = vmul.f32 %v363, 0.01
  %v366 = vsel %vm364, %v363, %v365
  %v367 = vlaneseq
  %v368 = vshrl.u32 %v367, 7
  %v369 = vsub.s32 6, %v368
  %v370 = vrot.slane %v32, %v369
  %v371 = vmul.f32 %v366, %v370
  %v372 = vsel %vm332, %v371, 0.0
  %373 = vadd.xlane.f32.xlu0 %v372
  %v374 = vpop.xlane.xlu0 %373
  %v375 = vlaneseq
  %v376 = vshrl.u32 %v375, 7
  %v377 = vsub.s32 7, %v376
  %v378 = vrot.slane %v32, %v377
  %v379 = vadd.f32 %v374, %v378
  %vm380 = vcmask 7168
  %381 = vst.msk [vmem:[%s3] sm:$0xff] %vm380, %v379
  // Predicated region
  $region14: #{tpu_custom_call.1} parent=0 // pred_check
    _
  $region15: #{tpu_custom_call.1} parent=0 // pred_check_branch
    %383 = sbr.rel (0) target = $region17
  $region16: #{tpu_custom_call.1} parent=0 // pred_region
    _
  $region17: #{tpu_custom_call.1} parent=0 // pred_fallthru
    _
  // Predicated region
  $region18: #{tpu_custom_call.1} parent=0 // pred_check
    _
  $region19: #{tpu_custom_call.1} parent=0 // pred_check_branch
    %385 = sbr.rel (0) target = $region21
  $region20: #{tpu_custom_call.1} parent=0 // pred_region
    _
  $region21: #{tpu_custom_call.1} parent=0 // pred_fallthru
    _

</llo_original>
